<compile_context>
chip_gen: v7x
topology: tpu7x:2x2x1
jax: 0.10.0
libtpu: 0.0.40
codegen_flags: <defaults>
</compile_context>

<pallas_src>
import functools

import jax
import jax.numpy as jnp
from jax.experimental import pallas as pl
from jax.experimental.pallas import tpu as pltpu

LN_EPS = 1e-5
LANE = 128
_INV_SQRT2 = 0.7071067811865476


def _gelu_exact(x):
    # PyTorch nn.GELU() default is the exact erf formulation.
    return 0.5 * x * (1.0 + jax.lax.erf(x * _INV_SQRT2))


def _gelu(x, approximate):
    if approximate:
        return jax.nn.gelu(x, approximate=True)  # tanh form -> EUP slot
    return _gelu_exact(x)


def _layernorm_masked(x, gamma, beta, true_dim):
    """LayerNorm over the first `true_dim` lanes of x.

    Assumes lanes >= true_dim of x are exactly zero (guaranteed by zero-padded
    weights / biases / residual), so the mean is a plain lane sum.  Centered
    two-pass variance matches torch.nn.LayerNorm numerics.
    """
    padded = x.shape[-1]
    inv_n = 1.0 / true_dim
    mean = jnp.sum(x, axis=-1, keepdims=True) * inv_n
    centered = x - mean
    if true_dim != padded:
        lane = jax.lax.broadcasted_iota(jnp.int32, x.shape, x.ndim - 1)
        centered = jnp.where(lane < true_dim, centered, 0.0)
    var = jnp.sum(centered * centered, axis=-1, keepdims=True) * inv_n
    inv = jax.lax.rsqrt(var + LN_EPS)
    return centered * inv * gamma + beta


def residual_block_kernel(
    x_ref,     # (TB, x_dim)     f32 activation tile (also the residual)
    yt_ref,    # (TB, yt_dim)    conditioning tile (f32 or bf16)
    w1_ref,    # (in_dim, W_pad) first Linear weight  (cols >= W are zero)
    b1_ref,    # (1, W_pad)
    g1_ref,    # (1, W_pad)      LayerNorm(W) weight  (cols >= W are zero)
    be1_ref,   # (1, W_pad)      LayerNorm(W) bias
    w2_ref,    # (W_pad, out_pad) second Linear weight (extra rows/cols zero)
    b2_ref,    # (1, out_pad)
    g2_ref,    # (1, out_pad)
    be2_ref,   # (1, out_pad)
    out_ref,   # (TB, out_pad)   lane-dense output slab
    *,
    hidden_dim,   # true W       (LN1 statistics width)
    out_dim,      # true out_dim (LN2 statistics width)
    approx_gelu,
):
    mm = w1_ref.dtype            # bf16 fast path or f32 exact path
    x_f32 = x_ref[...].astype(jnp.float32)

    # --- Linear(in_dim, W): one MXU contraction over concat([x, yt]) --------
    in_x = jnp.concatenate(
        [x_ref[...].astype(mm), yt_ref[...].astype(mm)], axis=-1)
    h = jnp.dot(in_x, w1_ref[...], preferred_element_type=jnp.float32)
    h += b1_ref[...]

    # --- LayerNorm(W) + GELU (padded lanes of h are exactly zero) -----------
    h = _gelu(_layernorm_masked(h, g1_ref[...], be1_ref[...], hidden_dim),
              approx_gelu)

    # --- Linear(W, out_dim) ---------------------------------------------------
    o = jnp.dot(h.astype(mm), w2_ref[...], preferred_element_type=jnp.float32)
    o += b2_ref[...]

    # --- Residual add (reuse the x tile already in VMEM; zero-extend lanes) --
    pad_cols = out_ref.shape[-1] - x_f32.shape[-1]
    if pad_cols:
        x_f32 = jnp.concatenate(
            [x_f32, jnp.zeros((x_f32.shape[0], pad_cols), jnp.float32)],
            axis=-1)
    o += x_f32

    # --- LayerNorm(out_dim) + GELU -------------------------------------------
    o = _gelu(_layernorm_masked(o, g2_ref[...], be2_ref[...], out_dim),
              approx_gelu)

    out_ref[...] = o.astype(out_ref.dtype)


def _round_up(v, m):
    return (v + m - 1) // m * m


def _round_down(v, m):
    return (v // m) * m


def _pad_last(a, total):
    pad = total - a.shape[-1]
    return a if pad == 0 else jnp.pad(a, [(0, 0)] * (a.ndim - 1) + [(0, pad)])


@functools.partial(
    jax.jit, static_argnames=("block_rows", "use_bf16_matmul", "approx_gelu"))
def residual_block(x, yt, params, *, block_rows=256, use_bf16_matmul=False,
                   approx_gelu=False):
    """x: (B, out_dim), yt: (B, yt_dim). Returns (B, out_dim)."""
    B, x_dim = x.shape
    yt_dim = yt.shape[1]
    W = params["w1"].shape[1]
    out_dim = params["w2"].shape[1]
    assert out_dim == x_dim, "residual add requires out_dim == x.shape[-1]"
    assert params["w1"].shape[0] == x_dim + yt_dim

    # Lane-dense padded widths (zero padding; LN statistics use the true dims).
    w_pad = _round_up(W, LANE)
    out_pad = _round_up(out_dim, LANE)

    mm_dtype = jnp.bfloat16 if use_bf16_matmul else jnp.float32

    # Weights: pad with zeros, cast the matmul operands to the MXU dtype.
    w1 = _pad_last(params["w1"], w_pad).astype(mm_dtype)              # (in_dim, w_pad)
    w2 = jnp.pad(params["w2"],
                 ((0, w_pad - W), (0, out_pad - out_dim))).astype(mm_dtype)
    b1 = _pad_last(params["b1"].reshape(1, W), w_pad)
    g1 = _pad_last(params["ln1_g"].reshape(1, W), w_pad)
    be1 = _pad_last(params["ln1_b"].reshape(1, W), w_pad)
    b2 = _pad_last(params["b2"].reshape(1, out_dim), out_pad)
    g2 = _pad_last(params["ln2_g"].reshape(1, out_dim), out_pad)
    be2 = _pad_last(params["ln2_b"].reshape(1, out_dim), out_pad)

    # bf16 fast path: also cast yt (its DMA bytes actually halve).  x stays f32
    # -- the residual add needs it at full precision and it is read only once.
    yt_in = yt.astype(mm_dtype) if use_bf16_matmul else yt

    # ---- Batch tile size -----------------------------------------------------
    # MXU utilization here is set by K (= in_dim) and N (= w_pad / out_pad),
    # not by TB, so TB is chosen for pipelining depth and vreg pressure:
    #   * >= 8 grid steps (>= 4 per v7x TensorCore) so BlockSpec double
    #     buffering overlaps the x/yt/out DMA with compute,
    #   * <= 128 rows once the hidden width reaches 512 so the (TB, W) f32
    #     intermediates fit the 64-vreg file (no spill traffic),
    #   * never below ~32 rows (per-grid-step overhead ~0.35 us).
    sub = 16 if use_bf16_matmul else 8          # bf16 packs 2 rows / sublane
    tb = min(block_rows, B)
    if w_pad >= 512:
        tb = min(tb, 128)
    tb = min(tb, max(32, pl.cdiv(B, 8)))
    if tb < B:
        tb = max(sub, _round_down(tb, sub))
    grid = (pl.cdiv(B, tb),)

    def tiled(cols):
        # Activation tiles: move with the batch grid index (double-buffered).
        return pl.BlockSpec((tb, cols), lambda i: (i, 0))

    def resident(arr):
        # Weights / biases / LN params: constant block index (fetched once) and
        # single-buffered -> half the VMEM footprint (matters on v7x's 64 MiB
        # VMEM as W grows).
        return pl.BlockSpec(arr.shape, lambda i: (0, 0),
                            pipeline_mode=pl.Buffered(1))

    operands = (x, yt_in, w1, b1, g1, be1, w2, b2, g2, be2)
    in_specs = [
        tiled(x_dim), tiled(yt_dim),
        resident(w1), resident(b1), resident(g1), resident(be1),
        resident(w2), resident(b2), resident(g2), resident(be2),
    ]

    kernel = functools.partial(residual_block_kernel, hidden_dim=W,
                               out_dim=out_dim, approx_gelu=approx_gelu)

    out_padded = pl.pallas_call(
        kernel,
        out_shape=jax.ShapeDtypeStruct((B, out_pad), x.dtype),
        grid_spec=pltpu.PrefetchScalarGridSpec(
            num_scalar_prefetch=0,
            grid=grid,
            in_specs=in_specs,
            out_specs=pl.BlockSpec((tb, out_pad), lambda i: (i, 0)),
        ),
        compiler_params=pltpu.CompilerParams(
            # Batch tiles are independent: shard across v7x's two TensorCores.
            dimension_semantics=("parallel",),
            # NOTE: set vmem_limit_bytes explicitly here if W grows enough that
            # the resident weights + activation double-buffers exceed the
            # scoped default (16 MiB v5e, 32 MiB v6e/v7x).
        ),
    )(*operands)

    # Drop the zero lanes (kernel writes a lane-dense slab).
    return out_padded[:, :out_dim] if out_pad != out_dim else out_padded


def init_params(key, in_dim, out_dim, w):
    """Deterministic synthetic parameters (shapes match the PyTorch module)."""
    k1, k2, k3, k4 = jax.random.split(key, 4)
    s1 = 1.0 / jnp.sqrt(in_dim)
    s2 = 1.0 / jnp.sqrt(w)
    return {
        # nn.Linear(in_dim, w): torch weight is (w, in_dim); stored transposed.
        "w1": jax.random.uniform(k1, (in_dim, w), jnp.float32, -s1, s1),
        "b1": jax.random.uniform(k2, (w,), jnp.float32, -s1, s1),
        "ln1_g": jnp.ones((w,), jnp.float32),
        "ln1_b": jnp.zeros((w,), jnp.float32),
        # nn.Linear(w, out_dim)
        "w2": jax.random.uniform(k3, (w, out_dim), jnp.float32, -s2, s2),
        "b2": jax.random.uniform(k4, (out_dim,), jnp.float32, -s2, s2),
        "ln2_g": jnp.ones((out_dim,), jnp.float32),
        "ln2_b": jnp.zeros((out_dim,), jnp.float32),
    }


def _ln_ref(x, g, b):
    mean = jnp.mean(x, axis=-1, keepdims=True)
    var = jnp.mean((x - mean) ** 2, axis=-1, keepdims=True)
    return (x - mean) * jax.lax.rsqrt(var + LN_EPS) * g + b


def residual_block_ref(x, yt, p):
    """Pure-JAX reference (mirrors the PyTorch forward exactly, f32)."""
    hi = jax.lax.Precision.HIGHEST
    in_x = jnp.concatenate([x, yt], axis=-1)
    h = jnp.dot(in_x, p["w1"], precision=hi) + p["b1"]
    h = _gelu_exact(_ln_ref(h, p["ln1_g"], p["ln1_b"]))
    o = jnp.dot(h, p["w2"], precision=hi) + p["b2"]
    o = o + x
    return _gelu_exact(_ln_ref(o, p["ln2_g"], p["ln2_b"]))


if __name__ == "__main__":
    key = jax.random.PRNGKey(0)
    kx, ky, kp = jax.random.split(key, 3)

    B = 512          # batch of points -> 8 grid steps of 64 rows (pipelined)
    X_DIM = 32       # out_dim must equal x's feature dim (residual add)
    YT_DIM = 8       # conditioning (e.g. y + t) features
    HIDDEN_W = 64    # module default is 512; small synthetic width (padded to 128)

    in_dim = X_DIM + YT_DIM
    out_dim = X_DIM

    x = jax.random.normal(kx, (B, X_DIM), jnp.float32)
    yt = jax.random.normal(ky, (B, YT_DIM), jnp.float32)
    params = init_params(kp, in_dim, out_dim, HIDDEN_W)

    ref = residual_block_ref(x, yt, params)

    # Exact (f32 matmul) path: must match the PyTorch-equivalent reference.
    out_f32 = jax.block_until_ready(residual_block(x, yt, params))
    assert out_f32.shape == (B, out_dim)
    assert jnp.allclose(out_f32, ref, atol=1e-4, rtol=1e-4), "f32 path mismatch"

    # Fast (bf16 MXU) path: same semantics, reduced matmul precision.
    out_bf16 = jax.block_until_ready(
        residual_block(x, yt, params, use_bf16_matmul=True))
    assert out_bf16.shape == (B, out_dim)
    assert jnp.max(jnp.abs(out_bf16 - ref)) < 1e-1, "bf16 path mismatch"

    print("KERNEL_OK")
</pallas_src>

<mosaic_0001>
module attributes {stable_mosaic.version = 11 : i64} {
  func.func @residual_block_kernel(%arg0: i32, %arg1: memref<64x32xf32, #tpu.memory_space<vmem>>, %arg2: memref<64x8xf32, #tpu.memory_space<vmem>>, %arg3: memref<40x128xf32, #tpu.memory_space<vmem>>, %arg4: memref<1x128xf32, #tpu.memory_space<vmem>>, %arg5: memref<1x128xf32, #tpu.memory_space<vmem>>, %arg6: memref<1x128xf32, #tpu.memory_space<vmem>>, %arg7: memref<128x128xf32, #tpu.memory_space<vmem>>, %arg8: memref<1x128xf32, #tpu.memory_space<vmem>>, %arg9: memref<1x128xf32, #tpu.memory_space<vmem>>, %arg10: memref<1x128xf32, #tpu.memory_space<vmem>>, %arg11: memref<64x128xf32, #tpu.memory_space<vmem>>) attributes {dimension_semantics = [#tpu.dimension_semantics<parallel>], iteration_bounds = array<i64: 8>, scalar_prefetch = 0 : i64, scratch_operands = 0 : i64, tpu.core_type = #tpu.core_type<tc>, window_params = [{transform_indices = @transform_0, window_bounds = array<i64: 64, 32>}, {transform_indices = @transform_1, window_bounds = array<i64: 64, 8>}, {pipeline_mode = #tpu.pipeline_mode<synchronous>, transform_indices = @transform_2, window_bounds = array<i64: 40, 128>}, {pipeline_mode = #tpu.pipeline_mode<synchronous>, transform_indices = @transform_3, window_bounds = array<i64: 1, 128>}, {pipeline_mode = #tpu.pipeline_mode<synchronous>, transform_indices = @transform_4, window_bounds = array<i64: 1, 128>}, {pipeline_mode = #tpu.pipeline_mode<synchronous>, transform_indices = @transform_5, window_bounds = array<i64: 1, 128>}, {pipeline_mode = #tpu.pipeline_mode<synchronous>, transform_indices = @transform_6, window_bounds = array<i64: 128, 128>}, {pipeline_mode = #tpu.pipeline_mode<synchronous>, transform_indices = @transform_7, window_bounds = array<i64: 1, 128>}, {pipeline_mode = #tpu.pipeline_mode<synchronous>, transform_indices = @transform_8, window_bounds = array<i64: 1, 128>}, {pipeline_mode = #tpu.pipeline_mode<synchronous>, transform_indices = @transform_9, window_bounds = array<i64: 1, 128>}, {transform_indices = @transform_10, window_bounds = array<i64: 64, 128>}]} {
    %c0 = arith.constant 0 : index
    %c0_0 = arith.constant 0 : index
    %0 = vector.load %arg1[%c0, %c0_0] : memref<64x32xf32, #tpu.memory_space<vmem>>, vector<64x32xf32>
    %c0_1 = arith.constant 0 : index
    %c0_2 = arith.constant 0 : index
    %1 = vector.load %arg1[%c0_1, %c0_2] : memref<64x32xf32, #tpu.memory_space<vmem>>, vector<64x32xf32>
    %c0_3 = arith.constant 0 : index
    %c0_4 = arith.constant 0 : index
    %2 = vector.load %arg2[%c0_3, %c0_4] : memref<64x8xf32, #tpu.memory_space<vmem>>, vector<64x8xf32>
    %3 = tpu.concatenate %1, %2 in 1 : vector<64x32xf32>, vector<64x8xf32> -> vector<64x40xf32>
    %c0_5 = arith.constant 0 : index
    %c0_6 = arith.constant 0 : index
    %4 = vector.load %arg3[%c0_5, %c0_6] : memref<40x128xf32, #tpu.memory_space<vmem>>, vector<40x128xf32>
    %cst = arith.constant dense<0.000000e+00> : vector<64x128xf32>
    %5 = tpu.matmul %3, %4, %cst {dimension_numbers = #tpu.dot_dimension_numbers<[1], [0], [0], [1], [0, 0, 1, 1], [], []>} : vector<64x40xf32>, vector<40x128xf32>, vector<64x128xf32> -> vector<64x128xf32>
    %c0_7 = arith.constant 0 : index
    %c0_8 = arith.constant 0 : index
    %6 = vector.load %arg4[%c0_7, %c0_8] : memref<1x128xf32, #tpu.memory_space<vmem>>, vector<1x128xf32>
    %7 = vector.broadcast %6 : vector<1x128xf32> to vector<64x128xf32>
    %8 = arith.addf %5, %7 : vector<64x128xf32>
    %c0_9 = arith.constant 0 : index
    %c0_10 = arith.constant 0 : index
    %9 = vector.load %arg5[%c0_9, %c0_10] : memref<1x128xf32, #tpu.memory_space<vmem>>, vector<1x128xf32>
    %c0_11 = arith.constant 0 : index
    %c0_12 = arith.constant 0 : index
    %10 = vector.load %arg6[%c0_11, %c0_12] : memref<1x128xf32, #tpu.memory_space<vmem>>, vector<1x128xf32>
    %cst_13 = arith.constant dense<0.000000e+00> : vector<64xf32>
    %11 = vector.multi_reduction <add>, %8, %cst_13 [1] : vector<64x128xf32> to vector<64xf32>
    %12 = vector.shape_cast %11 : vector<64xf32> to vector<64x1xf32>
    %cst_14 = arith.constant 1.562500e-02 : f32
    %13 = vector.broadcast %cst_14 : f32 to vector<64x1xf32>
    %14 = arith.mulf %12, %13 : vector<64x1xf32>
    %15 = vector.broadcast %14 : vector<64x1xf32> to vector<64x128xf32>
    %16 = arith.subf %8, %15 : vector<64x128xf32>
    %17 = tpu.iota {dimensions = array<i32: 1>} : vector<64x128xi32>
    %c64_i32 = arith.constant 64 : i32
    %18 = vector.broadcast %c64_i32 : i32 to vector<64x128xi32>
    %19 = arith.cmpi slt, %17, %18 : vector<64x128xi32>
    %cst_15 = arith.constant 0.000000e+00 : f32
    %20 = vector.broadcast %cst_15 : f32 to vector<64x128xf32>
    %21 = arith.select %19, %16, %20 : vector<64x128xi1>, vector<64x128xf32>
    %22 = arith.mulf %21, %21 : vector<64x128xf32>
    %cst_16 = arith.constant dense<0.000000e+00> : vector<64xf32>
    %23 = vector.multi_reduction <add>, %22, %cst_16 [1] : vector<64x128xf32> to vector<64xf32>
    %24 = vector.shape_cast %23 : vector<64xf32> to vector<64x1xf32>
    %cst_17 = arith.constant 1.562500e-02 : f32
    %25 = vector.broadcast %cst_17 : f32 to vector<64x1xf32>
    %26 = arith.mulf %24, %25 : vector<64x1xf32>
    %cst_18 = arith.constant 9.99999974E-6 : f32
    %27 = vector.broadcast %cst_18 : f32 to vector<64x1xf32>
    %28 = arith.addf %26, %27 : vector<64x1xf32>
    %29 = math.rsqrt %28 : vector<64x1xf32>
    %30 = vector.broadcast %29 : vector<64x1xf32> to vector<64x128xf32>
    %31 = arith.mulf %21, %30 : vector<64x128xf32>
    %32 = vector.broadcast %9 : vector<1x128xf32> to vector<64x128xf32>
    %33 = arith.mulf %31, %32 : vector<64x128xf32>
    %34 = vector.broadcast %10 : vector<1x128xf32> to vector<64x128xf32>
    %35 = arith.addf %33, %34 : vector<64x128xf32>
    %cst_19 = arith.constant 5.000000e-01 : f32
    %36 = vector.broadcast %cst_19 : f32 to vector<64x128xf32>
    %37 = arith.mulf %36, %35 : vector<64x128xf32>
    %cst_20 = arith.constant 0.707106769 : f32
    %38 = vector.broadcast %cst_20 : f32 to vector<64x128xf32>
    %39 = arith.mulf %35, %38 : vector<64x128xf32>
    %40 = math.erf %39 : vector<64x128xf32>
    %cst_21 = arith.constant 1.000000e+00 : f32
    %41 = vector.broadcast %cst_21 : f32 to vector<64x128xf32>
    %42 = arith.addf %41, %40 : vector<64x128xf32>
    %43 = arith.mulf %37, %42 : vector<64x128xf32>
    %c0_22 = arith.constant 0 : index
    %c0_23 = arith.constant 0 : index
    %44 = vector.load %arg7[%c0_22, %c0_23] : memref<128x128xf32, #tpu.memory_space<vmem>>, vector<128x128xf32>
    %cst_24 = arith.constant dense<0.000000e+00> : vector<64x128xf32>
    %45 = tpu.matmul %43, %44, %cst_24 {dimension_numbers = #tpu.dot_dimension_numbers<[1], [0], [0], [1], [0, 0, 1, 1], [], []>} : vector<64x128xf32>, vector<128x128xf32>, vector<64x128xf32> -> vector<64x128xf32>
    %c0_25 = arith.constant 0 : index
    %c0_26 = arith.constant 0 : index
    %46 = vector.load %arg8[%c0_25, %c0_26] : memref<1x128xf32, #tpu.memory_space<vmem>>, vector<1x128xf32>
    %47 = vector.broadcast %46 : vector<1x128xf32> to vector<64x128xf32>
    %48 = arith.addf %45, %47 : vector<64x128xf32>
    %cst_27 = arith.constant 0.000000e+00 : f32
    %49 = vector.broadcast %cst_27 : f32 to vector<64x96xf32>
    %50 = tpu.concatenate %0, %49 in 1 : vector<64x32xf32>, vector<64x96xf32> -> vector<64x128xf32>
    %51 = arith.addf %48, %50 : vector<64x128xf32>
    %c0_28 = arith.constant 0 : index
    %c0_29 = arith.constant 0 : index
    %52 = vector.load %arg9[%c0_28, %c0_29] : memref<1x128xf32, #tpu.memory_space<vmem>>, vector<1x128xf32>
    %c0_30 = arith.constant 0 : index
    %c0_31 = arith.constant 0 : index
    %53 = vector.load %arg10[%c0_30, %c0_31] : memref<1x128xf32, #tpu.memory_space<vmem>>, vector<1x128xf32>
    %cst_32 = arith.constant dense<0.000000e+00> : vector<64xf32>
    %54 = vector.multi_reduction <add>, %51, %cst_32 [1] : vector<64x128xf32> to vector<64xf32>
    %55 = vector.shape_cast %54 : vector<64xf32> to vector<64x1xf32>
    %cst_33 = arith.constant 3.125000e-02 : f32
    %56 = vector.broadcast %cst_33 : f32 to vector<64x1xf32>
    %57 = arith.mulf %55, %56 : vector<64x1xf32>
    %58 = vector.broadcast %57 : vector<64x1xf32> to vector<64x128xf32>
    %59 = arith.subf %51, %58 : vector<64x128xf32>
    %60 = tpu.iota {dimensions = array<i32: 1>} : vector<64x128xi32>
    %c32_i32 = arith.constant 32 : i32
    %61 = vector.broadcast %c32_i32 : i32 to vector<64x128xi32>
    %62 = arith.cmpi slt, %60, %61 : vector<64x128xi32>
    %cst_34 = arith.constant 0.000000e+00 : f32
    %63 = vector.broadcast %cst_34 : f32 to vector<64x128xf32>
    %64 = arith.select %62, %59, %63 : vector<64x128xi1>, vector<64x128xf32>
    %65 = arith.mulf %64, %64 : vector<64x128xf32>
    %cst_35 = arith.constant dense<0.000000e+00> : vector<64xf32>
    %66 = vector.multi_reduction <add>, %65, %cst_35 [1] : vector<64x128xf32> to vector<64xf32>
    %67 = vector.shape_cast %66 : vector<64xf32> to vector<64x1xf32>
    %cst_36 = arith.constant 3.125000e-02 : f32
    %68 = vector.broadcast %cst_36 : f32 to vector<64x1xf32>
    %69 = arith.mulf %67, %68 : vector<64x1xf32>
    %cst_37 = arith.constant 9.99999974E-6 : f32
    %70 = vector.broadcast %cst_37 : f32 to vector<64x1xf32>
    %71 = arith.addf %69, %70 : vector<64x1xf32>
    %72 = math.rsqrt %71 : vector<64x1xf32>
    %73 = vector.broadcast %72 : vector<64x1xf32> to vector<64x128xf32>
    %74 = arith.mulf %64, %73 : vector<64x128xf32>
    %75 = vector.broadcast %52 : vector<1x128xf32> to vector<64x128xf32>
    %76 = arith.mulf %74, %75 : vector<64x128xf32>
    %77 = vector.broadcast %53 : vector<1x128xf32> to vector<64x128xf32>
    %78 = arith.addf %76, %77 : vector<64x128xf32>
    %cst_38 = arith.constant 5.000000e-01 : f32
    %79 = vector.broadcast %cst_38 : f32 to vector<64x128xf32>
    %80 = arith.mulf %79, %78 : vector<64x128xf32>
    %cst_39 = arith.constant 0.707106769 : f32
    %81 = vector.broadcast %cst_39 : f32 to vector<64x128xf32>
    %82 = arith.mulf %78, %81 : vector<64x128xf32>
    %83 = math.erf %82 : vector<64x128xf32>
    %cst_40 = arith.constant 1.000000e+00 : f32
    %84 = vector.broadcast %cst_40 : f32 to vector<64x128xf32>
    %85 = arith.addf %84, %83 : vector<64x128xf32>
    %86 = arith.mulf %80, %85 : vector<64x128xf32>
    %c0_41 = arith.constant 0 : index
    %c0_42 = arith.constant 0 : index
    %87 = vector.load %arg11[%c0_41, %c0_42] : memref<64x128xf32, #tpu.memory_space<vmem>>, vector<64x128xf32>
    tpu.vector_store %arg11[%c0_41, %c0_42], %86 {strides = array<i32>} : memref<64x128xf32, #tpu.memory_space<vmem>>, vector<64x128xf32>,
    return
  }
  func.func @transform_0(%arg0: i32) -> (i32, i32) {
    %c0_i32 = arith.constant 0 : i32
    %c0_i32_0 = arith.constant 0 : i32
    return %arg0, %c0_i32 : i32, i32
  }
  func.func @transform_1(%arg0: i32) -> (i32, i32) {
    %c0_i32 = arith.constant 0 : i32
    %c0_i32_0 = arith.constant 0 : i32
    return %arg0, %c0_i32 : i32, i32
  }
  func.func @transform_2(%arg0: i32) -> (i32, i32) {
    %c0_i32 = arith.constant 0 : i32
    %c0_i32_0 = arith.constant 0 : i32
    %c0_i32_1 = arith.constant 0 : i32
    return %c0_i32, %c0_i32_0 : i32, i32
  }
  func.func @transform_3(%arg0: i32) -> (i32, i32) {
    %c0_i32 = arith.constant 0 : i32
    %c0_i32_0 = arith.constant 0 : i32
    %c0_i32_1 = arith.constant 0 : i32
    return %c0_i32, %c0_i32_0 : i32, i32
  }
  func.func @transform_4(%arg0: i32) -> (i32, i32) {
    %c0_i32 = arith.constant 0 : i32
    %c0_i32_0 = arith.constant 0 : i32
    %c0_i32_1 = arith.constant 0 : i32
    return %c0_i32, %c0_i32_0 : i32, i32
  }
  func.func @transform_5(%arg0: i32) -> (i32, i32) {
    %c0_i32 = arith.constant 0 : i32
    %c0_i32_0 = arith.constant 0 : i32
    %c0_i32_1 = arith.constant 0 : i32
    return %c0_i32, %c0_i32_0 : i32, i32
  }
  func.func @transform_6(%arg0: i32) -> (i32, i32) {
    %c0_i32 = arith.constant 0 : i32
    %c0_i32_0 = arith.constant 0 : i32
    %c0_i32_1 = arith.constant 0 : i32
    return %c0_i32, %c0_i32_0 : i32, i32
  }
  func.func @transform_7(%arg0: i32) -> (i32, i32) {
    %c0_i32 = arith.constant 0 : i32
    %c0_i32_0 = arith.constant 0 : i32
    %c0_i32_1 = arith.constant 0 : i32
    return %c0_i32, %c0_i32_0 : i32, i32
  }
  func.func @transform_8(%arg0: i32) -> (i32, i32) {
    %c0_i32 = arith.constant 0 : i32
    %c0_i32_0 = arith.constant 0 : i32
    %c0_i32_1 = arith.constant 0 : i32
    return %c0_i32, %c0_i32_0 : i32, i32
  }
  func.func @transform_9(%arg0: i32) -> (i32, i32) {
    %c0_i32 = arith.constant 0 : i32
    %c0_i32_0 = arith.constant 0 : i32
    %c0_i32_1 = arith.constant 0 : i32
    return %c0_i32, %c0_i32_0 : i32, i32
  }
  func.func @transform_10(%arg0: i32) -> (i32, i32) {
    %c0_i32 = arith.constant 0 : i32
    %c0_i32_0 = arith.constant 0 : i32
    return %arg0, %c0_i32 : i32, i32
  }
}

</mosaic_0001>

<llo_original>
// kernel: residual_block.1
$region0: #{residual_block.1}
  #allocation0 [shape = 'u32[]', space=smem, size = 0x4, offset = 0x4, fixed_abs, tag = 'smem constant byte address 0x4 - core index']
  #allocation1 [shape = 'u32[144,128]{1,0:T(1,128)}', space=vmem, size = 0x12000, scoped, tag = 'internal scratch']
  %s0 = inlined_call_operand.vmem [shape: f32[512,32], index: 0, kind: input, shape index: {}]
  %s1 = inlined_call_operand.vmem [shape: f32[512,8], index: 1, kind: input, shape index: {}]
  %s2 = inlined_call_operand.vmem [shape: f32[40,128], index: 2, kind: input, shape index: {}]
  %s3 = inlined_call_operand.vmem [shape: f32[1,128], index: 3, kind: input, shape index: {}]
  %s4 = inlined_call_operand.vmem [shape: f32[1,128], index: 4, kind: input, shape index: {}]
  %s5 = inlined_call_operand.vmem [shape: f32[1,128], index: 5, kind: input, shape index: {}]
  %s6 = inlined_call_operand.vmem [shape: f32[128,128], index: 6, kind: input, shape index: {}]
  %s7 = inlined_call_operand.vmem [shape: f32[1,128], index: 7, kind: input, shape index: {}]
  %s8 = inlined_call_operand.vmem [shape: f32[1,128], index: 8, kind: input, shape index: {}]
  %s9 = inlined_call_operand.vmem [shape: f32[1,128], index: 9, kind: input, shape index: {}]
  %s10 = inlined_call_operand.vmem [shape: f32[512,128], index: 10, kind: output, shape index: {}]
  %s11 = sld [smem:[#allocation0]]
  $region73: #{residual_block.1} parent=0
    _
  %s13 = ssub.s32 1, %s11
  %s14 = scalar_select 0, %s13, %s11
  loop: start=0, step=1, limit=10
  $region2: #{residual_block.1} parent=0 // loop_pre_header
    _
  $region3: #{residual_block.1} parent=0 // loop_header
    %s16 = sphi 0, %s20
    %p17 = scmp.ge.s32.totalorder %s16, 10
    %s26 = sphi 0, %s28
    %s29 = sphi 0, %s26
    %s30 = sphi 0, %s29
    %s46 = sphi 0, %s30
    %s52 = sphi 0, %s54
    %s55 = sphi 0, %s52
    %s56 = sphi 0, %s55
    %s72 = sphi 0, %s56
    %s76 = sphi 0, %s76
    %s78 = sphi 0, %s76
    %s79 = sphi 0, %s78
    %s93 = sphi 0, %s79
    %s97 = sphi 0, %s97
    %s99 = sphi 0, %s97
    %s100 = sphi 0, %s99
    %s114 = sphi 0, %s100
    %s118 = sphi 0, %s118
    %s120 = sphi 0, %s118
    %s121 = sphi 0, %s120
    %s135 = sphi 0, %s121
    %s139 = sphi 0, %s139
    %s141 = sphi 0, %s139
    %s142 = sphi 0, %s141
    %s156 = sphi 0, %s142
    %s160 = sphi 0, %s160
    %s162 = sphi 0, %s160
    %s163 = sphi 0, %s162
    %s177 = sphi 0, %s163
    %s181 = sphi 0, %s181
    %s183 = sphi 0, %s181
    %s184 = sphi 0, %s183
    %s198 = sphi 0, %s184
    %s202 = sphi 0, %s202
    %s204 = sphi 0, %s202
    %s205 = sphi 0, %s204
    %s219 = sphi 0, %s205
    %s223 = sphi 0, %s223
    %s225 = sphi 0, %s223
    %s226 = sphi 0, %s225
    %s240 = sphi 0, %s226
    %s246 = sphi 0, %s248
    %s249 = sphi 0, %s246
    %s250 = sphi 0, %s249
    %s266 = sphi 0, %s250
  $region4: #{residual_block.1} parent=0 // loop_header_branch
    %19 = sbr.rel (%p17) target = $region8
  $region5: #{residual_block.1} parent=0 // loop_body
    %s21 = ssub.s32 %s16, 1
    %s22 = ssub.s32 %s16, 2
    %s23 = sadd.s32 %s16, 1
    %s24 = ssub.s32 %s16, %s23
    %p25 = scmp.eq.s32.totalorder %s24, 0
    %s27 = sadd.s32 %s26, 1
    %s28 = scalar_select %p25, %s26, %s27
    %p31 = pneg %p25
    %p32 = scmp.eq.s32.totalorder %s16, 7
    %p33 = por %p31, %p32
    %p34 = scmp.ne.s32.totalorder %s26, %s29
    %p35 = scmp.eq.s32.totalorder %s16, 0
    %p36 = por %p34, %p35
    %p37 = scmp.ne.s32.totalorder %s26, %s29
    %p38 = scmp.eq.s32.totalorder %s21, 7
    %p39 = por %p37, %p38
    %p40 = scmp.ne.s32.totalorder %s29, %s30
    %p41 = scmp.eq.s32.totalorder %s21, 0
    %p42 = por %p40, %p41
    %p43 = scmp.ne.s32.totalorder %s29, %s30
    %p44 = scmp.eq.s32.totalorder %s22, 7
    %p45 = por %p43, %p44
    %p47 = scmp.ne.s32.totalorder %s30, %s46
    %p48 = scmp.eq.s32.totalorder %s22, 0
    %p49 = por %p47, %p48
    %s50 = ssub.s32 %s16, %s23
    %p51 = scmp.eq.s32.totalorder %s50, 0
    %s53 = sadd.s32 %s52, 1
    %s54 = scalar_select %p51, %s52, %s53
    %p57 = pneg %p51
    %p58 = scmp.eq.s32.totalorder %s16, 7
    %p59 = por %p57, %p58
    %p60 = scmp.ne.s32.totalorder %s52, %s55
    %p61 = scmp.eq.s32.totalorder %s16, 0
    %p62 = por %p60, %p61
    %p63 = scmp.ne.s32.totalorder %s52, %s55
    %p64 = scmp.eq.s32.totalorder %s21, 7
    %p65 = por %p63, %p64
    %p66 = scmp.ne.s32.totalorder %s55, %s56
    %p67 = scmp.eq.s32.totalorder %s21, 0
    %p68 = por %p66, %p67
    %p69 = scmp.ne.s32.totalorder %s55, %s56
    %p70 = scmp.eq.s32.totalorder %s22, 7
    %p71 = por %p69, %p70
    %p73 = scmp.ne.s32.totalorder %s56, %s72
    %p74 = scmp.eq.s32.totalorder %s22, 0
    %p75 = por %p73, %p74
    %s77 = sadd.s32 %s76, 1
    %p80 = scmp.eq.s32.totalorder %s16, 7
    %p81 = scmp.ne.s32.totalorder %s76, %s78
    %p82 = scmp.eq.s32.totalorder %s16, 0
    %p83 = por %p81, %p82
    %p84 = scmp.ne.s32.totalorder %s76, %s78
    %p85 = scmp.eq.s32.totalorder %s21, 7
    %p86 = por %p84, %p85
    %p87 = scmp.ne.s32.totalorder %s78, %s79
    %p88 = scmp.eq.s32.totalorder %s21, 0
    %p89 = por %p87, %p88
    %p90 = scmp.ne.s32.totalorder %s78, %s79
    %p91 = scmp.eq.s32.totalorder %s22, 7
    %p92 = por %p90, %p91
    %p94 = scmp.ne.s32.totalorder %s79, %s93
    %p95 = scmp.eq.s32.totalorder %s22, 0
    %p96 = por %p94, %p95
    %s98 = sadd.s32 %s97, 1
    %p101 = scmp.eq.s32.totalorder %s16, 7
    %p102 = scmp.ne.s32.totalorder %s97, %s99
    %p103 = scmp.eq.s32.totalorder %s16, 0
    %p104 = por %p102, %p103
    %p105 = scmp.ne.s32.totalorder %s97, %s99
    %p106 = scmp.eq.s32.totalorder %s21, 7
    %p107 = por %p105, %p106
    %p108 = scmp.ne.s32.totalorder %s99, %s100
    %p109 = scmp.eq.s32.totalorder %s21, 0
    %p110 = por %p108, %p109
    %p111 = scmp.ne.s32.totalorder %s99, %s100
    %p112 = scmp.eq.s32.totalorder %s22, 7
    %p113 = por %p111, %p112
    %p115 = scmp.ne.s32.totalorder %s100, %s114
    %p116 = scmp.eq.s32.totalorder %s22, 0
    %p117 = por %p115, %p116
    %s119 = sadd.s32 %s118, 1
    %p122 = scmp.eq.s32.totalorder %s16, 7
    %p123 = scmp.ne.s32.totalorder %s118, %s120
    %p124 = scmp.eq.s32.totalorder %s16, 0
    %p125 = por %p123, %p124
    %p126 = scmp.ne.s32.totalorder %s118, %s120
    %p127 = scmp.eq.s32.totalorder %s21, 7
    %p128 = por %p126, %p127
    %p129 = scmp.ne.s32.totalorder %s120, %s121
    %p130 = scmp.eq.s32.totalorder %s21, 0
    %p131 = por %p129, %p130
    %p132 = scmp.ne.s32.totalorder %s120, %s121
    %p133 = scmp.eq.s32.totalorder %s22, 7
    %p134 = por %p132, %p133
    %p136 = scmp.ne.s32.totalorder %s121, %s135
    %p137 = scmp.eq.s32.totalorder %s22, 0
    %p138 = por %p136, %p137
    %s140 = sadd.s32 %s139, 1
    %p143 = scmp.eq.s32.totalorder %s16, 7
    %p144 = scmp.ne.s32.totalorder %s139, %s141
    %p145 = scmp.eq.s32.totalorder %s16, 0
    %p146 = por %p144, %p145
    %p147 = scmp.ne.s32.totalorder %s139, %s141
    %p148 = scmp.eq.s32.totalorder %s21, 7
    %p149 = por %p147, %p148
    %p150 = scmp.ne.s32.totalorder %s141, %s142
    %p151 = scmp.eq.s32.totalorder %s21, 0
    %p152 = por %p150, %p151
    %p153 = scmp.ne.s32.totalorder %s141, %s142
    %p154 = scmp.eq.s32.totalorder %s22, 7
    %p155 = por %p153, %p154
    %p157 = scmp.ne.s32.totalorder %s142, %s156
    %p158 = scmp.eq.s32.totalorder %s22, 0
    %p159 = por %p157, %p158
    %s161 = sadd.s32 %s160, 1
    %p164 = scmp.eq.s32.totalorder %s16, 7
    %p165 = scmp.ne.s32.totalorder %s160, %s162
    %p166 = scmp.eq.s32.totalorder %s16, 0
    %p167 = por %p165, %p166
    %p168 = scmp.ne.s32.totalorder %s160, %s162
    %p169 = scmp.eq.s32.totalorder %s21, 7
    %p170 = por %p168, %p169
    %p171 = scmp.ne.s32.totalorder %s162, %s163
    %p172 = scmp.eq.s32.totalorder %s21, 0
    %p173 = por %p171, %p172
    %p174 = scmp.ne.s32.totalorder %s162, %s163
    %p175 = scmp.eq.s32.totalorder %s22, 7
    %p176 = por %p174, %p175
    %p178 = scmp.ne.s32.totalorder %s163, %s177
    %p179 = scmp.eq.s32.totalorder %s22, 0
    %p180 = por %p178, %p179
    %s182 = sadd.s32 %s181, 1
    %p185 = scmp.eq.s32.totalorder %s16, 7
    %p186 = scmp.ne.s32.totalorder %s181, %s183
    %p187 = scmp.eq.s32.totalorder %s16, 0
    %p188 = por %p186, %p187
    %p189 = scmp.ne.s32.totalorder %s181, %s183
    %p190 = scmp.eq.s32.totalorder %s21, 7
    %p191 = por %p189, %p190
    %p192 = scmp.ne.s32.totalorder %s183, %s184
    %p193 = scmp.eq.s32.totalorder %s21, 0
    %p194 = por %p192, %p193
    %p195 = scmp.ne.s32.totalorder %s183, %s184
    %p196 = scmp.eq.s32.totalorder %s22, 7
    %p197 = por %p195, %p196
    %p199 = scmp.ne.s32.totalorder %s184, %s198
    %p200 = scmp.eq.s32.totalorder %s22, 0
    %p201 = por %p199, %p200
    %s203 = sadd.s32 %s202, 1
    %p206 = scmp.eq.s32.totalorder %s16, 7
    %p207 = scmp.ne.s32.totalorder %s202, %s204
    %p208 = scmp.eq.s32.totalorder %s16, 0
    %p209 = por %p207, %p208
    %p210 = scmp.ne.s32.totalorder %s202, %s204
    %p211 = scmp.eq.s32.totalorder %s21, 7
    %p212 = por %p210, %p211
    %p213 = scmp.ne.s32.totalorder %s204, %s205
    %p214 = scmp.eq.s32.totalorder %s21, 0
    %p215 = por %p213, %p214
    %p216 = scmp.ne.s32.totalorder %s204, %s205
    %p217 = scmp.eq.s32.totalorder %s22, 7
    %p218 = por %p216, %p217
    %p220 = scmp.ne.s32.totalorder %s205, %s219
    %p221 = scmp.eq.s32.totalorder %s22, 0
    %p222 = por %p220, %p221
    %s224 = sadd.s32 %s223, 1
    %p227 = scmp.eq.s32.totalorder %s16, 7
    %p228 = scmp.ne.s32.totalorder %s223, %s225
    %p229 = scmp.eq.s32.totalorder %s16, 0
    %p230 = por %p228, %p229
    %p231 = scmp.ne.s32.totalorder %s223, %s225
    %p232 = scmp.eq.s32.totalorder %s21, 7
    %p233 = por %p231, %p232
    %p234 = scmp.ne.s32.totalorder %s225, %s226
    %p235 = scmp.eq.s32.totalorder %s21, 0
    %p236 = por %p234, %p235
    %p237 = scmp.ne.s32.totalorder %s225, %s226
    %p238 = scmp.eq.s32.totalorder %s22, 7
    %p239 = por %p237, %p238
    %p241 = scmp.ne.s32.totalorder %s226, %s240
    %p242 = scmp.eq.s32.totalorder %s22, 0
    %p243 = por %p241, %p242
    %s244 = ssub.s32 %s16, %s23
    %p245 = scmp.eq.s32.totalorder %s244, 0
    %s247 = sadd.s32 %s246, 1
    %s248 = scalar_select %p245, %s246, %s247
    %p251 = pneg %p245
    %p252 = scmp.eq.s32.totalorder %s16, 7
    %p253 = por %p251, %p252
    %p254 = scmp.ne.s32.totalorder %s246, %s249
    %p255 = scmp.eq.s32.totalorder %s16, 0
    %p256 = por %p254, %p255
    %p257 = scmp.ne.s32.totalorder %s246, %s249
    %p258 = scmp.eq.s32.totalorder %s21, 7
    %p259 = por %p257, %p258
    %p260 = scmp.ne.s32.totalorder %s249, %s250
    %p261 = scmp.eq.s32.totalorder %s21, 0
    %p262 = por %p260, %p261
    %p263 = scmp.ne.s32.totalorder %s249, %s250
    %p264 = scmp.eq.s32.totalorder %s22, 7
    %p265 = por %p263, %p264
    %p267 = scmp.ne.s32.totalorder %s250, %s266
    %p268 = scmp.eq.s32.totalorder %s22, 0
    %p269 = por %p267, %p268
    %p270 = scmp.le.s32.totalorder 1, %s16
    %p271 = scmp.lt.s32.totalorder %s16, 9
    %p272 = pnand %p270, %p271
    %p273 = pneg %p272
    // Predicated region
    $region9: #{residual_block.1} parent=5 // pred_check
      _
    $region10: #{residual_block.1} parent=5 // pred_check_branch
      %275 = sbr.rel (%p272) target = $region12
    $region11: #{residual_block.1} parent=5 // pred_region
      %s276 = ssub.s32 %s16, 1
      // Predicated region
      $region13: #{residual_block.1} parent=11 // pred_check
        %p277 = pneg %p89
      $region14: #{residual_block.1} parent=11 // pred_check_branch
        %279 = sbr.rel (%p277) target = $region16
      $region15: #{residual_block.1} parent=11 // pred_region
        _
      $region16: #{residual_block.1} parent=11 // pred_fallthru
        _
      // Predicated region
      $region17: #{residual_block.1} parent=11 // pred_check
        %p280 = pneg %p110
      $region18: #{residual_block.1} parent=11 // pred_check_branch
        %282 = sbr.rel (%p280) target = $region20
      $region19: #{residual_block.1} parent=11 // pred_region
        _
      $region20: #{residual_block.1} parent=11 // pred_fallthru
        _
      // Predicated region
      $region21: #{residual_block.1} parent=11 // pred_check
        %p283 = pneg %p131
      $region22: #{residual_block.1} parent=11 // pred_check_branch
        %285 = sbr.rel (%p283) target = $region24
      $region23: #{residual_block.1} parent=11 // pred_region
        _
      $region24: #{residual_block.1} parent=11 // pred_fallthru
        _
      // Predicated region
      $region25: #{residual_block.1} parent=11 // pred_check
        %p286 = pneg %p152
      $region26: #{residual_block.1} parent=11 // pred_check_branch
        %288 = sbr.rel (%p286) target = $region28
      $region27: #{residual_block.1} parent=11 // pred_region
        _
      $region28: #{residual_block.1} parent=11 // pred_fallthru
        _
      // Predicated region
      $region29: #{residual_block.1} parent=11 // pred_check
        %p289 = pneg %p173
      $region30: #{residual_block.1} parent=11 // pred_check_branch
        %291 = sbr.rel (%p289) target = $region32
      $region31: #{residual_block.1} parent=11 // pred_region
        _
      $region32: #{residual_block.1} parent=11 // pred_fallthru
        _
      // Predicated region
      $region33: #{residual_block.1} parent=11 // pred_check
        %p292 = pneg %p194
      $region34: #{residual_block.1} parent=11 // pred_check_branch
        %294 = sbr.rel (%p292) target = $region36
      $region35: #{residual_block.1} parent=11 // pred_region
        _
      $region36: #{residual_block.1} parent=11 // pred_fallthru
        _
      // Predicated region
      $region37: #{residual_block.1} parent=11 // pred_check
        %p295 = pneg %p215
      $region38: #{residual_block.1} parent=11 // pred_check_branch
        %297 = sbr.rel (%p295) target = $region40
      $region39: #{residual_block.1} parent=11 // pred_region
        _
      $region40: #{residual_block.1} parent=11 // pred_fallthru
        _
      // Predicated region
      $region41: #{residual_block.1} parent=11 // pred_check
        %p298 = pneg %p236
      $region42: #{residual_block.1} parent=11 // pred_check_branch
        %300 = sbr.rel (%p298) target = $region44
      $region43: #{residual_block.1} parent=11 // pred_region
        _
      $region44: #{residual_block.1} parent=11 // pred_fallthru
        _
    $region12: #{residual_block.1} parent=5 // pred_fallthru
      _
    %p301 = scmp.lt.s32.totalorder %s16, 8
    // Predicated region
    $region45: #{residual_block.1} parent=5 // pred_check
      %p302 = pneg %p301
    $region46: #{residual_block.1} parent=5 // pred_check_branch
      %304 = sbr.rel (%p302) target = $region48
    $region47: #{residual_block.1} parent=5 // pred_region
      // Predicated region
      $region49: #{residual_block.1} parent=47 // pred_check
        %p305 = pneg %p36
      $region50: #{residual_block.1} parent=47 // pred_check_branch
        %307 = sbr.rel (%p305) target = $region52
      $region51: #{residual_block.1} parent=47 // pred_region
        %s308 = smul.u32 8, %s16
        %p309 = scmp.lt.s32.totalorder %s308, 63
        %s310 = scalar_select %p309, %s308, 63
        %s311 = smul.addr %s310, 8
        %s312 = scalar_lea.vmem %s0, %s311
        %s313 = smul.u32 8, %s16
      $region52: #{residual_block.1} parent=47 // pred_fallthru
        _
      // Predicated region
      $region53: #{residual_block.1} parent=47 // pred_check
        %p314 = pneg %p62
      $region54: #{residual_block.1} parent=47 // pred_check_branch
        %316 = sbr.rel (%p314) target = $region56
      $region55: #{residual_block.1} parent=47 // pred_region
        %s317 = smul.u32 8, %s16
        %p318 = scmp.lt.s32.totalorder %s317, 63
        %s319 = scalar_select %p318, %s317, 63
        %s320 = smul.addr %s319, 8
        %s321 = scalar_lea.vmem %s1, %s320
        %s322 = smul.u32 8, %s16
      $region56: #{residual_block.1} parent=47 // pred_fallthru
        _
    $region48: #{residual_block.1} parent=5 // pred_fallthru
      _
    %p323 = scmp.le.s32.totalorder 1, %s16
    %p324 = scmp.lt.s32.totalorder %s16, 9
    %p325 = pnand %p323, %p324
    %p326 = pneg %p325
    // Predicated region
    $region57: #{residual_block.1} parent=5 // pred_check
      _
    $region58: #{residual_block.1} parent=5 // pred_check_branch
      %328 = sbr.rel (%p325) target = $region60
    $region59: #{residual_block.1} parent=5 // pred_region
      %s329 = ssub.s32 %s16, 1
      %s330 = smul.u32 8, %s21
      %p331 = scmp.lt.s32.totalorder %s330, 63
      %s332 = scalar_select %p331, %s330, 63
      %s333 = smul.addr %s332, 8
      %s334 = scalar_lea.vmem %s0, %s333
      %p335 = pneg %p42
      %p336 = pneg %p39
      %s337 = smul.u32 8, %s21
      %p338 = scmp.lt.s32.totalorder %s337, 63
      %s339 = scalar_select %p338, %s337, 63
      %s340 = smul.addr %s339, 8
      %s341 = scalar_lea.vmem %s1, %s340
      %p342 = pneg %p68
      %p343 = pneg %p65
      %p344 = pneg %p89
      %p345 = pneg %p86
      %p346 = pneg %p110
      %p347 = pneg %p107
      %p348 = pneg %p131
      %p349 = pneg %p128
      %p350 = pneg %p152
      %p351 = pneg %p149
      %p352 = pneg %p173
      %p353 = pneg %p170
      %p354 = pneg %p194
      %p355 = pneg %p191
      %p356 = pneg %p215
      %p357 = pneg %p212
      %p358 = pneg %p236
      %p359 = pneg %p233
      %p360 = pneg %p262
      %p361 = pneg %p259
      %s362 = smul.u32 8, %s21
      %p363 = scmp.lt.s32.totalorder %s362, 63
      %s364 = scalar_select %p363, %s362, 63
      %s365 = smul.addr %s364, 8
      %s366 = scalar_lea.vmem %s10, %s365
      %s367 = smul.u32 8, %s21
      %p368 = scmp.lt.s32.totalorder %s367, 63
      %s369 = scalar_select %p368, %s367, 63
      %s370 = smul.addr %s369, 8
      %s371 = scalar_lea.vmem %s0, %s370
      %s372 = smul.u32 8, %s21
      %s373 = smul.u32 8, %s21
      %p374 = scmp.lt.s32.totalorder %s373, 63
      %s375 = scalar_select %p374, %s373, 63
      %s376 = smul.addr %s375, 8
      %s377 = scalar_lea.vmem %s1, %s376
      %s378 = smul.u32 8, %s21
      %s379 = smul.u32 8, %s21
      %p380 = scmp.lt.s32.totalorder %s379, 63
      %s381 = scalar_select %p380, %s379, 63
      %s382 = smul.addr %s381, 8
      %s383 = scalar_lea.vmem %s10, %s382
      %s384 = smul.u32 8, %s21
      %v385 = vld [vmem:[%s371] sm:$0xff]
      %v386 = vld [vmem:[%s371 + $0x8] sm:$0xff]
      %v387 = vld [vmem:[%s371 + $0x10] sm:$0xff]
      %v388 = vld [vmem:[%s371 + $0x18] sm:$0xff]
      %v389 = vld [vmem:[%s371 + $0x20] sm:$0xff]
      %v390 = vld [vmem:[%s371 + $0x28] sm:$0xff]
      %v391 = vld [vmem:[%s371 + $0x30] sm:$0xff]
      %v392 = vld [vmem:[%s371 + $0x38] sm:$0xff]
      %v393 = vld [vmem:[%s377] sm:$0xff]
      %v394 = vld [vmem:[%s377 + $0x8] sm:$0xff]
      %v395 = vld [vmem:[%s377 + $0x10] sm:$0xff]
      %v396 = vld [vmem:[%s377 + $0x18] sm:$0xff]
      %v397 = vld [vmem:[%s377 + $0x20] sm:$0xff]
      %v398 = vld [vmem:[%s377 + $0x28] sm:$0xff]
      %v399 = vld [vmem:[%s377 + $0x30] sm:$0xff]
      %v400 = vld [vmem:[%s377 + $0x38] sm:$0xff]
      %409 = vrot.lane.b32.xlu0 %v393, 32
      %v410 = vpop.permute.xlu0 %409
      %411 = vrot.lane.b32.xlu0 %v394, 32
      %v412 = vpop.permute.xlu0 %411
      %413 = vrot.lane.b32.xlu0 %v395, 32
      %v414 = vpop.permute.xlu0 %413
      %415 = vrot.lane.b32.xlu0 %v396, 32
      %v416 = vpop.permute.xlu0 %415
      %417 = vrot.lane.b32.xlu0 %v397, 32
      %v418 = vpop.permute.xlu0 %417
      %419 = vrot.lane.b32.xlu0 %v398, 32
      %v420 = vpop.permute.xlu0 %419
      %421 = vrot.lane.b32.xlu0 %v399, 32
      %v422 = vpop.permute.xlu0 %421
      %423 = vrot.lane.b32.xlu0 %v400, 32
      %v424 = vpop.permute.xlu0 %423
      %vm433 = vcmask 261120
      %v434 = vsel %vm433, %v385, %v410
      %v435 = vsel %vm433, %v386, %v412
      %v436 = vsel %vm433, %v387, %v414
      %v437 = vsel %vm433, %v388, %v416
      %v438 = vsel %vm433, %v389, %v418
      %v439 = vsel %vm433, %v390, %v420
      %v440 = vsel %vm433, %v391, %v422
      %v441 = vsel %vm433, %v392, %v424
      %v442 = vld [vmem:[%s2] sm:$0xff]
      %v443 = vld [vmem:[%s2 + $0x8] sm:$0xff]
      %v444 = vld [vmem:[%s2 + $0x10] sm:$0xff]
      %v445 = vld [vmem:[%s2 + $0x18] sm:$0xff]
      %v446 = vld [vmem:[%s2 + $0x20] sm:$0xff]
      %v447 = vld [vmem:[%s3] sm:$0x1]
      %v449 = vlaneseq
      %v450 = vshrl.u32 %v449, 7
      %v451 = vsub.s32 0, %v450
      %v452 = vrot.slane %v447, %v451
      %vm454 = vcmask 326656
      %v456 = vsel %vm454, %v434, 0
      %v459 = vsel %vm454, %v435, 0
      %v462 = vsel %vm454, %v436, 0
      %v465 = vsel %vm454, %v437, 0
      %v468 = vsel %vm454, %v438, 0
      %v471 = vsel %vm454, %v439, 0
      %v474 = vsel %vm454, %v440, 0
      %v477 = vsel %vm454, %v441, 0
      %479 = vmatprep.subr.mxu0 0.0
      %480 = vmatpush1.msra.mxu0 %v442
      %481 = vmatprep.subr.mxu0 0.0
      %482 = vmatpush1.msra.mxu0 %v443
      %483 = vmatprep.subr.mxu0 0.0
      %484 = vmatpush1.msra.mxu0 %v444
      %485 = vmatprep.subr.mxu0 0.0
      %486 = vmatpush1.msra.mxu0 %v445
      %487 = vmatprep.subr.mxu0 0.0
      %488 = vmatpush1.msra.mxu0 %v446
      %489 = vmatprep.subr.mxu0 0.0
      %490 = vmatpush1.msra.mxu0 0.0
      %491 = vmatprep.subr.mxu0 0.0
      %492 = vmatpush1.msra.mxu0 0.0
      %493 = vmatprep.subr.mxu0 0.0
      %494 = vmatpush1.msra.mxu0 0.0
      %495 = vmatprep.subr.mxu0 0.0
      %496 = vmatpush1.msra.mxu0 0.0
      %497 = vmatprep.subr.mxu0 0.0
      %498 = vmatpush1.msra.mxu0 0.0
      %499 = vmatprep.subr.mxu0 0.0
      %500 = vmatpush1.msra.mxu0 0.0
      %501 = vmatprep.subr.mxu0 0.0
      %502 = vmatpush1.msra.mxu0 0.0
      %503 = vmatprep.subr.mxu0 0.0
      %504 = vmatpush1.msra.mxu0 0.0
      %505 = vmatprep.subr.mxu0 0.0
      %506 = vmatpush1.msra.mxu0 0.0
      %507 = vmatprep.subr.mxu0 0.0
      %508 = vmatpush1.msra.mxu0 0.0
      %509 = vmatprep.subr.mxu0 0.0
      %510 = vmatpush1.msra.mxu0 0.0
      %511 = vmatprep.subr.mxu0 0.0
      %512 = vmatpush1.msra.mxu0 0.0
      %513 = vmatprep.subr.mxu0 0.0
      %514 = vmatpush1.msra.mxu0 0.0
      %515 = vmatprep.subr.mxu0 0.0
      %516 = vmatpush1.msra.mxu0 0.0
      %517 = vmatprep.subr.mxu0 0.0
      %518 = vmatpush1.msra.mxu0 0.0
      %519 = vmatprep.subr.mxu0 0.0
      %520 = vmatpush1.msra.mxu0 0.0
      %521 = vmatprep.subr.mxu0 0.0
      %522 = vmatpush1.msra.mxu0 0.0
      %523 = vmatprep.subr.mxu0 0.0
      %524 = vmatpush1.msra.mxu0 0.0
      %525 = vmatprep.subr.mxu0 0.0
      %526 = vmatpush1.msra.mxu0 0.0
      %527 = vmatprep.subr.mxu0 0.0
      %528 = vmatpush1.msra.mxu0 0.0
      %529 = vmatprep.subr.mxu0 0.0
      %530 = vmatpush1.msra.mxu0 0.0
      %531 = vmatprep.subr.mxu0 0.0
      %532 = vmatpush1.msra.mxu0 0.0
      %533 = vmatprep.subr.mxu0 0.0
      %534 = vmatpush1.msra.mxu0 0.0
      %535 = vmatprep.subr.mxu0 0.0
      %536 = vmatpush1.msra.mxu0 0.0
      %537 = vmatprep.subr.mxu0 0.0
      %538 = vmatpush1.msra.mxu0 0.0
      %539 = vmatprep.subr.mxu0 0.0
      %540 = vmatpush1.msra.mxu0 0.0
      %541 = vmatprep.subr.mxu0 0.0
      %542 = vmatpush1.msra.mxu0 0.0
      %543 = vmatprep.mubr.f32.mxu0 0.0
      %544 = vmatmul.mubr.f32.gmra.mrb[0].mxu0 %v456
      %v545 = vpop.f32.mrb[0].mxu0
      %v546 = vadd.f32 %v452, %v545
      %v547 = vpop.f32.mrb[0].mxu0
      %548 = vmatprep.mubr.f32.mxu0 0.0
      %549 = vmatmul.mubr.f32.gmra.mrb[0].mxu0 %v459
      %v550 = vpop.f32.mrb[0].mxu0
      %v551 = vadd.f32 %v452, %v550
      %v552 = vpop.f32.mrb[0].mxu0
      %553 = vmatprep.mubr.f32.mxu0 0.0
      %554 = vmatmul.mubr.f32.gmra.mrb[0].mxu0 %v462
      %v555 = vpop.f32.mrb[0].mxu0
      %v556 = vadd.f32 %v452, %v555
      %v557 = vpop.f32.mrb[0].mxu0
      %558 = vmatprep.mubr.f32.mxu0 0.0
      %559 = vmatmul.mubr.f32.gmra.mrb[0].mxu0 %v465
      %v560 = vpop.f32.mrb[0].mxu0
      %v561 = vadd.f32 %v452, %v560
      %v562 = vpop.f32.mrb[0].mxu0
      %563 = vmatprep.mubr.f32.mxu0 0.0
      %564 = vmatmul.mubr.f32.gmra.mrb[0].mxu0 %v468
      %v565 = vpop.f32.mrb[0].mxu0
      %v566 = vadd.f32 %v452, %v565
      %v567 = vpop.f32.mrb[0].mxu0
      %568 = vmatprep.mubr.f32.mxu0 0.0
      %569 = vmatmul.mubr.f32.gmra.mrb[0].mxu0 %v471
      %v570 = vpop.f32.mrb[0].mxu0
      %v571 = vadd.f32 %v452, %v570
      %v572 = vpop.f32.mrb[0].mxu0
      %573 = vmatprep.mubr.f32.mxu0 0.0
      %574 = vmatmul.mubr.f32.gmra.mrb[0].mxu0 %v474
      %v575 = vpop.f32.mrb[0].mxu0
      %v576 = vadd.f32 %v452, %v575
      %v577 = vpop.f32.mrb[0].mxu0
      %578 = vmatprep.mubr.f32.mxu0 0.0
      %579 = vmatmul.mubr.f32.gmra.mrb[0].mxu0 %v477
      %v580 = vpop.f32.mrb[0].mxu0
      %v581 = vadd.f32 %v452, %v580
      %v582 = vpop.f32.mrb[0].mxu0
      %583 = vdwg.mxu0
      %v584 = vld [vmem:[%s4] sm:$0x1]
      %v585 = vld [vmem:[%s5] sm:$0x1]
      %586 = vadd.xlane.f32.xlu0 %v546
      %v587 = vpop.xlane.xlu0 %586
      %588 = vadd.xlane.f32.xlu0 %v551
      %v589 = vpop.xlane.xlu0 %588
      %590 = vadd.xlane.f32.xlu0 %v556
      %v591 = vpop.xlane.xlu0 %590
      %592 = vadd.xlane.f32.xlu0 %v561
      %v593 = vpop.xlane.xlu0 %592
      %594 = vadd.xlane.f32.xlu0 %v566
      %v595 = vpop.xlane.xlu0 %594
      %596 = vadd.xlane.f32.xlu0 %v571
      %v597 = vpop.xlane.xlu0 %596
      %598 = vadd.xlane.f32.xlu0 %v576
      %v599 = vpop.xlane.xlu0 %598
      %600 = vadd.xlane.f32.xlu0 %v581
      %v601 = vpop.xlane.xlu0 %600
      %v602 = vmul.f32 %v587, 0.015625
      %v603 = vmul.f32 %v589, 0.015625
      %v604 = vmul.f32 %v591, 0.015625
      %v605 = vmul.f32 %v593, 0.015625
      %v606 = vmul.f32 %v595, 0.015625
      %v607 = vmul.f32 %v597, 0.015625
      %v608 = vmul.f32 %v599, 0.015625
      %v609 = vmul.f32 %v601, 0.015625
      %v610 = vsub.f32 %v546, %v602
      %v611 = vsub.f32 %v551, %v603
      %v612 = vsub.f32 %v556, %v604
      %v613 = vsub.f32 %v561, %v605
      %v614 = vsub.f32 %v566, %v606
      %v615 = vsub.f32 %v571, %v607
      %v616 = vsub.f32 %v576, %v608
      %v617 = vsub.f32 %v581, %v609
      %v618 = vlaneseq
      %v619 = vand.u32 %v618, 127
      %vm620 = vcmp.lt.s32.totalorder %v619, 64
      %v621 = vsel %vm620, %v610, 0.0
      %v622 = vsel %vm620, %v611, 0.0
      %v623 = vsel %vm620, %v612, 0.0
      %v624 = vsel %vm620, %v613, 0.0
      %v625 = vsel %vm620, %v614, 0.0
      %v626 = vsel %vm620, %v615, 0.0
      %v627 = vsel %vm620, %v616, 0.0
      %v628 = vsel %vm620, %v617, 0.0
      %v629 = vmul.f32 %v621, %v621
      %v630 = vmul.f32 %v622, %v622
      %v631 = vmul.f32 %v623, %v623
      %v632 = vmul.f32 %v624, %v624
      %v633 = vmul.f32 %v625, %v625
      %v634 = vmul.f32 %v626, %v626
      %v635 = vmul.f32 %v627, %v627
      %v636 = vmul.f32 %v628, %v628
      %637 = vadd.xlane.f32.xlu0 %v629
      %v638 = vpop.xlane.xlu0 %637
      %639 = vadd.xlane.f32.xlu0 %v630
      %v640 = vpop.xlane.xlu0 %639
      %641 = vadd.xlane.f32.xlu0 %v631
      %v642 = vpop.xlane.xlu0 %641
      %643 = vadd.xlane.f32.xlu0 %v632
      %v644 = vpop.xlane.xlu0 %643
      %645 = vadd.xlane.f32.xlu0 %v633
      %v646 = vpop.xlane.xlu0 %645
      %647 = vadd.xlane.f32.xlu0 %v634
      %v648 = vpop.xlane.xlu0 %647
      %649 = vadd.xlane.f32.xlu0 %v635
      %v650 = vpop.xlane.xlu0 %649
      %651 = vadd.xlane.f32.xlu0 %v636
      %v652 = vpop.xlane.xlu0 %651
      %v653 = vmul.f32 %v638, 0.015625
      %v654 = vmul.f32 %v640, 0.015625
      %v655 = vmul.f32 %v642, 0.015625
      %v656 = vmul.f32 %v644, 0.015625
      %v657 = vmul.f32 %v646, 0.015625
      %v658 = vmul.f32 %v648, 0.015625
      %v659 = vmul.f32 %v650, 0.015625
      %v660 = vmul.f32 %v652, 0.015625
      %v661 = vadd.f32 %v653, 1e-05
      %v662 = vadd.f32 %v654, 1e-05
      %v663 = vadd.f32 %v655, 1e-05
      %v664 = vadd.f32 %v656, 1e-05
      %v665 = vadd.f32 %v657, 1e-05
      %v666 = vadd.f32 %v658, 1e-05
      %v667 = vadd.f32 %v659, 1e-05
      %v668 = vadd.f32 %v660, 1e-05
      %v669 = vrsqrt.pop %v661
      %v670 = vrsqrt.pop %v662
      %v671 = vrsqrt.pop %v663
      %v672 = vrsqrt.pop %v664
      %v673 = vrsqrt.pop %v665
      %v674 = vrsqrt.pop %v666
      %v675 = vrsqrt.pop %v667
      %v676 = vrsqrt.pop %v668
      %v677 = vmul.f32 %v621, %v669
      %v678 = vmul.f32 %v622, %v670
      %v679 = vmul.f32 %v623, %v671
      %v680 = vmul.f32 %v624, %v672
      %v681 = vmul.f32 %v625, %v673
      %v682 = vmul.f32 %v626, %v674
      %v683 = vmul.f32 %v627, %v675
      %v684 = vmul.f32 %v628, %v676
      %v686 = vlaneseq
      %v687 = vshrl.u32 %v686, 7
      %v688 = vsub.s32 0, %v687
      %v689 = vrot.slane %v584, %v688
      %v691 = vmul.f32 %v677, %v689
      %v692 = vmul.f32 %v678, %v689
      %v693 = vmul.f32 %v679, %v689
      %v694 = vmul.f32 %v680, %v689
      %v695 = vmul.f32 %v681, %v689
      %v696 = vmul.f32 %v682, %v689
      %v697 = vmul.f32 %v683, %v689
      %v698 = vmul.f32 %v684, %v689
      %v700 = vlaneseq
      %v701 = vshrl.u32 %v700, 7
      %v702 = vsub.s32 0, %v701
      %v703 = vrot.slane %v585, %v702
      %v705 = vadd.f32 %v691, %v703
      %v706 = vadd.f32 %v692, %v703
      %v707 = vadd.f32 %v693, %v703
      %v708 = vadd.f32 %v694, %v703
      %v709 = vadd.f32 %v695, %v703
      %v710 = vadd.f32 %v696, %v703
      %v711 = vadd.f32 %v697, %v703
      %v712 = vadd.f32 %v698, %v703
      %v713 = vmul.f32 %v705, 0.5
      %v714 = vmul.f32 %v706, 0.5
      %v715 = vmul.f32 %v707, 0.5
      %v716 = vmul.f32 %v708, 0.5
      %v717 = vmul.f32 %v709, 0.5
      %v718 = vmul.f32 %v710, 0.5
      %v719 = vmul.f32 %v711, 0.5
      %v720 = vmul.f32 %v712, 0.5
      %v721 = vmul.f32 %v705, 0.70710677
      %v722 = vmul.f32 %v706, 0.70710677
      %v723 = vmul.f32 %v707, 0.70710677
      %v724 = vmul.f32 %v708, 0.70710677
      %v725 = vmul.f32 %v709, 0.70710677
      %v726 = vmul.f32 %v710, 0.70710677
      %v727 = vmul.f32 %v711, 0.70710677
      %v728 = vmul.f32 %v712, 0.70710677
      %v729 = verf.f32.pop %v721
      %v730 = verf.f32.pop %v722
      %v731 = verf.f32.pop %v723
      %v732 = verf.f32.pop %v724
      %v733 = verf.f32.pop %v725
      %v734 = verf.f32.pop %v726
      %v735 = verf.f32.pop %v727
      %v736 = verf.f32.pop %v728
      %v737 = vadd.f32 %v729, 1.0
      %v738 = vadd.f32 %v730, 1.0
      %v739 = vadd.f32 %v731, 1.0
      %v740 = vadd.f32 %v732, 1.0
      %v741 = vadd.f32 %v733, 1.0
      %v742 = vadd.f32 %v734, 1.0
      %v743 = vadd.f32 %v735, 1.0
      %v744 = vadd.f32 %v736, 1.0
      %v745 = vmul.f32 %v713, %v737
      %v746 = vmul.f32 %v714, %v738
      %v747 = vmul.f32 %v715, %v739
      %v748 = vmul.f32 %v716, %v740
      %v749 = vmul.f32 %v717, %v741
      %v750 = vmul.f32 %v718, %v742
      %v751 = vmul.f32 %v719, %v743
      %v752 = vmul.f32 %v720, %v744
      %v753 = vld [vmem:[%s6] sm:$0xff]
      %v754 = vld [vmem:[%s6 + $0x8] sm:$0xff]
      %v755 = vld [vmem:[%s6 + $0x10] sm:$0xff]
      %v756 = vld [vmem:[%s6 + $0x18] sm:$0xff]
      %v757 = vld [vmem:[%s6 + $0x20] sm:$0xff]
      %v758 = vld [vmem:[%s6 + $0x28] sm:$0xff]
      %v759 = vld [vmem:[%s6 + $0x30] sm:$0xff]
      %v760 = vld [vmem:[%s6 + $0x38] sm:$0xff]
      %v761 = vld [vmem:[%s6 + $0x40] sm:$0xff]
      %v762 = vld [vmem:[%s6 + $0x48] sm:$0xff]
      %v763 = vld [vmem:[%s6 + $0x50] sm:$0xff]
      %v764 = vld [vmem:[%s6 + $0x58] sm:$0xff]
      %v765 = vld [vmem:[%s6 + $0x60] sm:$0xff]
      %v766 = vld [vmem:[%s6 + $0x68] sm:$0xff]
      %v767 = vld [vmem:[%s6 + $0x70] sm:$0xff]
      %v768 = vld [vmem:[%s6 + $0x78] sm:$0xff]
      %v769 = vld [vmem:[%s7] sm:$0x1]
      %v771 = vlaneseq
      %v772 = vshrl.u32 %v771, 7
      %v773 = vsub.s32 0, %v772
      %v774 = vrot.slane %v769, %v773
      %776 = vmatprep.subr.mxu0 0.0
      %777 = vmatpush1.msra.mxu0 %v753
      %778 = vmatprep.subr.mxu0 0.0
      %779 = vmatpush1.msra.mxu0 %v754
      %780 = vmatprep.subr.mxu0 0.0
      %781 = vmatpush1.msra.mxu0 %v755
      %782 = vmatprep.subr.mxu0 0.0
      %783 = vmatpush1.msra.mxu0 %v756
      %784 = vmatprep.subr.mxu0 0.0
      %785 = vmatpush1.msra.mxu0 %v757
      %786 = vmatprep.subr.mxu0 0.0
      %787 = vmatpush1.msra.mxu0 %v758
      %788 = vmatprep.subr.mxu0 0.0
      %789 = vmatpush1.msra.mxu0 %v759
      %790 = vmatprep.subr.mxu0 0.0
      %791 = vmatpush1.msra.mxu0 %v760
      %792 = vmatprep.subr.mxu0 0.0
      %793 = vmatpush1.msra.mxu0 %v761
      %794 = vmatprep.subr.mxu0 0.0
      %795 = vmatpush1.msra.mxu0 %v762
      %796 = vmatprep.subr.mxu0 0.0
      %797 = vmatpush1.msra.mxu0 %v763
      %798 = vmatprep.subr.mxu0 0.0
      %799 = vmatpush1.msra.mxu0 %v764
      %800 = vmatprep.subr.mxu0 0.0
      %801 = vmatpush1.msra.mxu0 %v765
      %802 = vmatprep.subr.mxu0 0.0
      %803 = vmatpush1.msra.mxu0 %v766
      %804 = vmatprep.subr.mxu0 0.0
      %805 = vmatpush1.msra.mxu0 %v767
      %806 = vmatprep.subr.mxu0 0.0
      %807 = vmatpush1.msra.mxu0 %v768
      %808 = vmatprep.subr.mxu0 0.0
      %809 = vmatpush1.msra.mxu0 0.0
      %810 = vmatprep.subr.mxu0 0.0
      %811 = vmatpush1.msra.mxu0 0.0
      %812 = vmatprep.subr.mxu0 0.0
      %813 = vmatpush1.msra.mxu0 0.0
      %814 = vmatprep.subr.mxu0 0.0
      %815 = vmatpush1.msra.mxu0 0.0
      %816 = vmatprep.subr.mxu0 0.0
      %817 = vmatpush1.msra.mxu0 0.0
      %818 = vmatprep.subr.mxu0 0.0
      %819 = vmatpush1.msra.mxu0 0.0
      %820 = vmatprep.subr.mxu0 0.0
      %821 = vmatpush1.msra.mxu0 0.0
      %822 = vmatprep.subr.mxu0 0.0
      %823 = vmatpush1.msra.mxu0 0.0
      %824 = vmatprep.subr.mxu0 0.0
      %825 = vmatpush1.msra.mxu0 0.0
      %826 = vmatprep.subr.mxu0 0.0
      %827 = vmatpush1.msra.mxu0 0.0
      %828 = vmatprep.subr.mxu0 0.0
      %829 = vmatpush1.msra.mxu0 0.0
      %830 = vmatprep.subr.mxu0 0.0
      %831 = vmatpush1.msra.mxu0 0.0
      %832 = vmatprep.subr.mxu0 0.0
      %833 = vmatpush1.msra.mxu0 0.0
      %834 = vmatprep.subr.mxu0 0.0
      %835 = vmatpush1.msra.mxu0 0.0
      %836 = vmatprep.subr.mxu0 0.0
      %837 = vmatpush1.msra.mxu0 0.0
      %838 = vmatprep.subr.mxu0 0.0
      %839 = vmatpush1.msra.mxu0 0.0
      %840 = vmatprep.mubr.f32.mxu0 0.0
      %841 = vmatmul.mubr.f32.gmra.mrb[0].mxu0 %v745
      %v842 = vpop.f32.mrb[0].mxu0
      %v843 = vadd.f32 %v774, %v842
      %v844 = vpop.f32.mrb[0].mxu0
      %845 = vmatprep.mubr.f32.mxu0 0.0
      %846 = vmatmul.mubr.f32.gmra.mrb[0].mxu0 %v746
      %v847 = vpop.f32.mrb[0].mxu0
      %v848 = vadd.f32 %v774, %v847
      %v849 = vpop.f32.mrb[0].mxu0
      %850 = vmatprep.mubr.f32.mxu0 0.0
      %851 = vmatmul.mubr.f32.gmra.mrb[0].mxu0 %v747
      %v852 = vpop.f32.mrb[0].mxu0
      %v853 = vadd.f32 %v774, %v852
      %v854 = vpop.f32.mrb[0].mxu0
      %855 = vmatprep.mubr.f32.mxu0 0.0
      %856 = vmatmul.mubr.f32.gmra.mrb[0].mxu0 %v748
      %v857 = vpop.f32.mrb[0].mxu0
      %v858 = vadd.f32 %v774, %v857
      %v859 = vpop.f32.mrb[0].mxu0
      %860 = vmatprep.mubr.f32.mxu0 0.0
      %861 = vmatmul.mubr.f32.gmra.mrb[0].mxu0 %v749
      %v862 = vpop.f32.mrb[0].mxu0
      %v863 = vadd.f32 %v774, %v862
      %v864 = vpop.f32.mrb[0].mxu0
      %865 = vmatprep.mubr.f32.mxu0 0.0
      %866 = vmatmul.mubr.f32.gmra.mrb[0].mxu0 %v750
      %v867 = vpop.f32.mrb[0].mxu0
      %v868 = vadd.f32 %v774, %v867
      %v869 = vpop.f32.mrb[0].mxu0
      %870 = vmatprep.mubr.f32.mxu0 0.0
      %871 = vmatmul.mubr.f32.gmra.mrb[0].mxu0 %v751
      %v872 = vpop.f32.mrb[0].mxu0
      %v873 = vadd.f32 %v774, %v872
      %v874 = vpop.f32.mrb[0].mxu0
      %875 = vmatprep.mubr.f32.mxu0 0.0
      %876 = vmatmul.mubr.f32.gmra.mrb[0].mxu0 %v752
      %v877 = vpop.f32.mrb[0].mxu0
      %v878 = vadd.f32 %v774, %v877
      %v879 = vpop.f32.mrb[0].mxu0
      %880 = vdwg.mxu0
      %v881 = vsel %vm433, %v385, 0.0
      %v882 = vsel %vm433, %v386, 0.0
      %v883 = vsel %vm433, %v387, 0.0
      %v884 = vsel %vm433, %v388, 0.0
      %v885 = vsel %vm433, %v389, 0.0
      %v886 = vsel %vm433, %v390, 0.0
      %v887 = vsel %vm433, %v391, 0.0
      %v888 = vsel %vm433, %v392, 0.0
      %v889 = vadd.f32 %v843, %v881
      %v890 = vadd.f32 %v848, %v882
      %v891 = vadd.f32 %v853, %v883
      %v892 = vadd.f32 %v858, %v884
      %v893 = vadd.f32 %v863, %v885
      %v894 = vadd.f32 %v868, %v886
      %v895 = vadd.f32 %v873, %v887
      %v896 = vadd.f32 %v878, %v888
      %v897 = vld [vmem:[%s8] sm:$0x1]
      %v898 = vld [vmem:[%s9] sm:$0x1]
      %899 = vadd.xlane.f32.xlu0 %v889
      %v900 = vpop.xlane.xlu0 %899
      %901 = vadd.xlane.f32.xlu0 %v890
      %v902 = vpop.xlane.xlu0 %901
      %903 = vadd.xlane.f32.xlu0 %v891
      %v904 = vpop.xlane.xlu0 %903
      %905 = vadd.xlane.f32.xlu0 %v892
      %v906 = vpop.xlane.xlu0 %905
      %907 = vadd.xlane.f32.xlu0 %v893
      %v908 = vpop.xlane.xlu0 %907
      %909 = vadd.xlane.f32.xlu0 %v894
      %v910 = vpop.xlane.xlu0 %909
      %911 = vadd.xlane.f32.xlu0 %v895
      %v912 = vpop.xlane.xlu0 %911
      %913 = vadd.xlane.f32.xlu0 %v896
      %v914 = vpop.xlane.xlu0 %913
      %v915 = vmul.f32 %v900, 0.03125
      %v916 = vmul.f32 %v902, 0.03125
      %v917 = vmul.f32 %v904, 0.03125
      %v918 = vmul.f32 %v906, 0.03125
      %v919 = vmul.f32 %v908, 0.03125
      %v920 = vmul.f32 %v910, 0.03125
      %v921 = vmul.f32 %v912, 0.03125
      %v922 = vmul.f32 %v914, 0.03125
      %v923 = vsub.f32 %v889, %v915
      %v924 = vsub.f32 %v890, %v916
      %v925 = vsub.f32 %v891, %v917
      %v926 = vsub.f32 %v892, %v918
      %v927 = vsub.f32 %v893, %v919
      %v928 = vsub.f32 %v894, %v920
      %v929 = vsub.f32 %v895, %v921
      %v930 = vsub.f32 %v896, %v922
      %vm931 = vcmp.lt.s32.totalorder %v619, 32
      %v932 = vsel %vm931, %v923, 0.0
      %v933 = vsel %vm931, %v924, 0.0
      %v934 = vsel %vm931, %v925, 0.0
      %v935 = vsel %vm931, %v926, 0.0
      %v936 = vsel %vm931, %v927, 0.0
      %v937 = vsel %vm931, %v928, 0.0
      %v938 = vsel %vm931, %v929, 0.0
      %v939 = vsel %vm931, %v930, 0.0
      %v940 = vmul.f32 %v932, %v932
      %v941 = vmul.f32 %v933, %v933
      %v942 = vmul.f32 %v934, %v934
      %v943 = vmul.f32 %v935, %v935
      %v944 = vmul.f32 %v936, %v936
      %v945 = vmul.f32 %v937, %v937
      %v946 = vmul.f32 %v938, %v938
      %v947 = vmul.f32 %v939, %v939
      %948 = vadd.xlane.f32.xlu0 %v940
      %v949 = vpop.xlane.xlu0 %948
      %950 = vadd.xlane.f32.xlu0 %v941
      %v951 = vpop.xlane.xlu0 %950
      %952 = vadd.xlane.f32.xlu0 %v942
      %v953 = vpop.xlane.xlu0 %952
      %954 = vadd.xlane.f32.xlu0 %v943
      %v955 = vpop.xlane.xlu0 %954
      %956 = vadd.xlane.f32.xlu0 %v944
      %v957 = vpop.xlane.xlu0 %956
      %958 = vadd.xlane.f32.xlu0 %v945
      %v959 = vpop.xlane.xlu0 %958
      %960 = vadd.xlane.f32.xlu0 %v946
      %v961 = vpop.xlane.xlu0 %960
      %962 = vadd.xlane.f32.xlu0 %v947
      %v963 = vpop.xlane.xlu0 %962
      %v964 = vmul.f32 %v949, 0.03125
      %v965 = vmul.f32 %v951, 0.03125
      %v966 = vmul.f32 %v953, 0.03125
      %v967 = vmul.f32 %v955, 0.03125
      %v968 = vmul.f32 %v957, 0.03125
      %v969 = vmul.f32 %v959, 0.03125
      %v970 = vmul.f32 %v961, 0.03125
      %v971 = vmul.f32 %v963, 0.03125
      %v972 = vadd.f32 %v964, 1e-05
      %v973 = vadd.f32 %v965, 1e-05
      %v974 = vadd.f32 %v966, 1e-05
      %v975 = vadd.f32 %v967, 1e-05
      %v976 = vadd.f32 %v968, 1e-05
      %v977 = vadd.f32 %v969, 1e-05
      %v978 = vadd.f32 %v970, 1e-05
      %v979 = vadd.f32 %v971, 1e-05
      %v980 = vrsqrt.pop %v972
      %v981 = vrsqrt.pop %v973
      %v982 = vrsqrt.pop %v974
      %v983 = vrsqrt.pop %v975
      %v984 = vrsqrt.pop %v976
      %v985 = vrsqrt.pop %v977
      %v986 = vrsqrt.pop %v978
      %v987 = vrsqrt.pop %v979
      %v988 = vmul.f32 %v932, %v980
      %v989 = vmul.f32 %v933, %v981
      %v990 = vmul.f32 %v934, %v982
      %v991 = vmul.f32 %v935, %v983
      %v992 = vmul.f32 %v936, %v984
      %v993 = vmul.f32 %v937, %v985
      %v994 = vmul.f32 %v938, %v986
      %v995 = vmul.f32 %v939, %v987
      %v997 = vlaneseq
      %v998 = vshrl.u32 %v997, 7
      %v999 = vsub.s32 0, %v998
      %v1000 = vrot.slane %v897, %v999
      %v1002 = vmul.f32 %v988, %v1000
      %v1003 = vmul.f32 %v989, %v1000
      %v1004 = vmul.f32 %v990, %v1000
      %v1005 = vmul.f32 %v991, %v1000
      %v1006 = vmul.f32 %v992, %v1000
      %v1007 = vmul.f32 %v993, %v1000
      %v1008 = vmul.f32 %v994, %v1000
      %v1009 = vmul.f32 %v995, %v1000
      %v1011 = vlaneseq
      %v1012 = vshrl.u32 %v1011, 7
      %v1013 = vsub.s32 0, %v1012
      %v1014 = vrot.slane %v898, %v1013
      %v1016 = vadd.f32 %v1002, %v1014
      %v1017 = vadd.f32 %v1003, %v1014
      %v1018 = vadd.f32 %v1004, %v1014
      %v1019 = vadd.f32 %v1005, %v1014
      %v1020 = vadd.f32 %v1006, %v1014
      %v1021 = vadd.f32 %v1007, %v1014
      %v1022 = vadd.f32 %v1008, %v1014
      %v1023 = vadd.f32 %v1009, %v1014
      %v1024 = vmul.f32 %v1016, 0.5
      %v1025 = vmul.f32 %v1017, 0.5
      %v1026 = vmul.f32 %v1018, 0.5
      %v1027 = vmul.f32 %v1019, 0.5
      %v1028 = vmul.f32 %v1020, 0.5
      %v1029 = vmul.f32 %v1021, 0.5
      %v1030 = vmul.f32 %v1022, 0.5
      %v1031 = vmul.f32 %v1023, 0.5
      %v1032 = vmul.f32 %v1016, 0.70710677
      %v1033 = vmul.f32 %v1017, 0.70710677
      %v1034 = vmul.f32 %v1018, 0.70710677
      %v1035 = vmul.f32 %v1019, 0.70710677
      %v1036 = vmul.f32 %v1020, 0.70710677
      %v1037 = vmul.f32 %v1021, 0.70710677
      %v1038 = vmul.f32 %v1022, 0.70710677
      %v1039 = vmul.f32 %v1023, 0.70710677
      %v1040 = verf.f32.pop %v1032
      %v1041 = verf.f32.pop %v1033
      %v1042 = verf.f32.pop %v1034
      %v1043 = verf.f32.pop %v1035
      %v1044 = verf.f32.pop %v1036
      %v1045 = verf.f32.pop %v1037
      %v1046 = verf.f32.pop %v1038
      %v1047 = verf.f32.pop %v1039
      %v1048 = vadd.f32 %v1040, 1.0
      %v1049 = vadd.f32 %v1041, 1.0
      %v1050 = vadd.f32 %v1042, 1.0
      %v1051 = vadd.f32 %v1043, 1.0
      %v1052 = vadd.f32 %v1044, 1.0
      %v1053 = vadd.f32 %v1045, 1.0
      %v1054 = vadd.f32 %v1046, 1.0
      %v1055 = vadd.f32 %v1047, 1.0
      %v1056 = vmul.f32 %v1024, %v1048
      %v1057 = vmul.f32 %v1025, %v1049
      %v1058 = vmul.f32 %v1026, %v1050
      %v1059 = vmul.f32 %v1027, %v1051
      %v1060 = vmul.f32 %v1028, %v1052
      %v1061 = vmul.f32 %v1029, %v1053
      %v1062 = vmul.f32 %v1030, %v1054
      %v1063 = vmul.f32 %v1031, %v1055
      %1064 = vst [vmem:[%s383] sm:$0xff] %v1056
      %1065 = vst [vmem:[%s383 + $0x8] sm:$0xff] %v1057
      %1066 = vst [vmem:[%s383 + $0x10] sm:$0xff] %v1058
      %1067 = vst [vmem:[%s383 + $0x18] sm:$0xff] %v1059
      %1068 = vst [vmem:[%s383 + $0x20] sm:$0xff] %v1060
      %1069 = vst [vmem:[%s383 + $0x28] sm:$0xff] %v1061
      %1070 = vst [vmem:[%s383 + $0x30] sm:$0xff] %v1062
      %1071 = vst [vmem:[%s383 + $0x38] sm:$0xff] %v1063
      %s1072 = smul.u32 8, %s21
      %p1073 = scmp.lt.s32.totalorder %s1072, 63
      %s1074 = scalar_select %p1073, %s1072, 63
      %s1075 = smul.addr %s1074, 8
      %s1076 = scalar_lea.vmem %s10, %s1075
      // Predicated region
      $region61: #{residual_block.1} parent=59 // pred_check
        %p1077 = pneg %p259
      $region62: #{residual_block.1} parent=59 // pred_check_branch
        %1079 = sbr.rel (%p1077) target = $region64
      $region63: #{residual_block.1} parent=59 // pred_region
        %s1080 = smul.u32 8, %s21
      $region64: #{residual_block.1} parent=59 // pred_fallthru
        _
    $region60: #{residual_block.1} parent=5 // pred_fallthru
      _
    %p1081 = scmp.le.s32.totalorder 2, %s16
    // Predicated region
    $region65: #{residual_block.1} parent=5 // pred_check
      %p1082 = pneg %p1081
    $region66: #{residual_block.1} parent=5 // pred_check_branch
      %1084 = sbr.rel (%p1082) target = $region68
    $region67: #{residual_block.1} parent=5 // pred_region
      %s1085 = ssub.s32 %s16, 2
      // Predicated region
      $region69: #{residual_block.1} parent=67 // pred_check
        %p1086 = pneg %p265
      $region70: #{residual_block.1} parent=67 // pred_check_branch
        %1088 = sbr.rel (%p1086) target = $region72
      $region71: #{residual_block.1} parent=67 // pred_region
        %s1089 = smul.u32 8, %s22
        %p1090 = scmp.lt.s32.totalorder %s1089, 63
        %s1091 = scalar_select %p1090, %s1089, 63
        %s1092 = smul.addr %s1091, 8
        %s1093 = scalar_lea.vmem %s10, %s1092
      $region72: #{residual_block.1} parent=67 // pred_fallthru
        _
    $region68: #{residual_block.1} parent=5 // pred_fallthru
      _
  $region6: #{residual_block.1} parent=0 // loop_footer
    %s20 = sadd.s32 1, %s16
  $region7: #{residual_block.1} parent=0 // loop_footer_branch
    %15 = sbr.rel target = $region3
  $region8: #{residual_block.1} parent=0 // loop_exit
    _

</llo_original>
